<compile_context>
chip_gen: v7x
topology: tpu7x:2x2x1
jax: 0.10.0
libtpu: 0.0.40
codegen_flags: <defaults>
</compile_context>

<pallas_src>
import jax
import jax.numpy as jnp
from jax.experimental import pallas as pl
from jax.experimental.pallas import tpu as pltpu

LANES = 128            # lane width of a vreg
SUBLANES = 8           # sublane depth of a 32-bit vreg
TARGET_TILE_ROWS = 2048  # ~1 MiB per f32 buffer; 6 live buffers ~= 6 MiB
MIN_GRID_STEPS = 2       # keep both v7x TensorCores busy when there is work


def _round_up(a, b):
    return ((a + b - 1) // b) * b


def _cdiv(a, b):
    return (a + b - 1) // b


def odefunc_kernel(w_ref, b_ref, x_ref, t_ref, out_ref):
    # w_ref (SMEM): (1, 2) Linear weight; b_ref (SMEM): (1,) bias.
    w0 = w_ref[0, 0]
    w1 = w_ref[0, 1]
    b = b_ref[0]
    # Forcing term ufun(t) = sin(t), fused in-kernel (transcendental slot).
    u = jnp.sin(t_ref[...])
    # Linear(2,1) on stack([x, u], dim=1), squeezed -> two scalar FMAs (VPU).
    out_ref[...] = x_ref[...] * w0 + u * w1 + b


def odefunc_forward(x, t, weight, bias):
    """x: (N,) state, t: (N,) times (ufun(t)=sin(t) fused in-kernel),
    weight: (1, 2), bias: (1,).  Returns (N,) = Linear(2,1)(stack(x, sin(t)))."""
    n = x.shape[0]

    # --- derive a lane/sublane-dense (rows, LANES) slab and its row tiling ---
    rows_raw = max(1, _cdiv(n, LANES))         # rows of 128 lanes needed
    rows8 = _round_up(rows_raw, SUBLANES)      # sublane alignment (8)

    # Number of grid steps: enough to keep tiles <= TARGET_TILE_ROWS, and at
    # least MIN_GRID_STEPS when each step still gets a full (8, 128) tile.
    nb = _cdiv(rows8, TARGET_TILE_ROWS)
    if rows8 >= MIN_GRID_STEPS * SUBLANES:
        nb = max(nb, MIN_GRID_STEPS)
    tile_r = _round_up(_cdiv(rows8, nb), SUBLANES)
    rows = tile_r * nb
    padded = rows * LANES

    x = x.astype(jnp.float32)
    t = t.astype(jnp.float32)
    if padded == n:
        # Aligned case: reshape is a free view — no extra HBM round-trip.
        x2 = x.reshape(rows, LANES)
        t2 = t.reshape(rows, LANES)
    else:
        x2 = jnp.pad(x, (0, padded - n)).reshape(rows, LANES)
        t2 = jnp.pad(t, (0, padded - n)).reshape(rows, LANES)

    out = pl.pallas_call(
        odefunc_kernel,
        out_shape=jax.ShapeDtypeStruct((rows, LANES), jnp.float32),
        grid=(nb,),
        in_specs=[
            pl.BlockSpec(memory_space=pltpu.MemorySpace.SMEM),   # weight (1,2)
            pl.BlockSpec(memory_space=pltpu.MemorySpace.SMEM),   # bias (1,)
            pl.BlockSpec((tile_r, LANES), lambda i: (i, 0)),     # x tile
            pl.BlockSpec((tile_r, LANES), lambda i: (i, 0)),     # t tile
        ],
        out_specs=pl.BlockSpec((tile_r, LANES), lambda i: (i, 0)),
        compiler_params=pltpu.CompilerParams(
            dimension_semantics=("parallel",),
        ),
    )(weight.astype(jnp.float32), bias.astype(jnp.float32), x2, t2)

    # .squeeze() in the PyTorch module -> flat (N,) vector.
    flat = out.reshape(padded)
    return flat if padded == n else flat[:n]


if __name__ == "__main__":
    key = jax.random.PRNGKey(0)
    k_x, k_w, k_b = jax.random.split(key, 3)

    # Deterministic "parameters" for nn.Linear(2, 1): U(-1/sqrt(2), 1/sqrt(2))
    bound = 1.0 / jnp.sqrt(2.0)
    weight = jax.random.uniform(k_w, (1, 2), jnp.float32, -bound, bound)
    bias = jax.random.uniform(k_b, (1,), jnp.float32, -bound, bound)

    def ref_forward(x, t):
        u = jnp.sin(t)                                  # ufun(t)
        in1 = jnp.stack((x, u), axis=1)                 # (N, 2)
        return (in1 @ weight.T + bias[None, :]).squeeze(-1)

    # N = 8: the tiny per-step shape from the module; N = 300: pad-and-trim
    # path; N = 5000: multi-step grid (>= 2 blocks, exercises v7x sharding);
    # N = 2048: exactly slab-aligned (no pad / no trim copies).
    for n in (8, 300, 2048, 5000):
        t = jnp.linspace(0.0, 25.0, n).astype(jnp.float32)
        x = jax.random.normal(k_x, (n,), jnp.float32)

        out = odefunc_forward(x, t, weight, bias)
        out = jax.block_until_ready(out)

        ref = ref_forward(x, t)
        assert out.shape == (n,), (out.shape, n)
        assert jnp.allclose(out, ref, atol=1e-5, rtol=1e-5), (out, ref)

    print("KERNEL_OK")
</pallas_src>

<mosaic_0001>
module attributes {stable_mosaic.version = 11 : i64} {
  func.func @odefunc_kernel(%arg0: i32, %arg1: memref<1x2xf32, #tpu.memory_space<smem>>, %arg2: memref<1xf32, #tpu.memory_space<smem>>, %arg3: memref<8x128xf32, #tpu.memory_space<vmem>>, %arg4: memref<8x128xf32, #tpu.memory_space<vmem>>, %arg5: memref<8x128xf32, #tpu.memory_space<vmem>>) attributes {dimension_semantics = [#tpu.dimension_semantics<parallel>], iteration_bounds = array<i64: 1>, scalar_prefetch = 0 : i64, scratch_operands = 0 : i64, tpu.core_type = #tpu.core_type<tc>, window_params = [{transform_indices = @transform_0, window_bounds = array<i64: 1, 2>}, {transform_indices = @transform_1, window_bounds = array<i64: 1>}, {transform_indices = @transform_2, window_bounds = array<i64: 8, 128>}, {transform_indices = @transform_3, window_bounds = array<i64: 8, 128>}, {transform_indices = @transform_4, window_bounds = array<i64: 8, 128>}]} {
    %c0 = arith.constant 0 : index
    %c0_0 = arith.constant 0 : index
    %0 = memref.load %arg1[%c0, %c0_0] : memref<1x2xf32, #tpu.memory_space<smem>>
    %c0_1 = arith.constant 0 : index
    %c1 = arith.constant 1 : index
    %1 = memref.load %arg1[%c0_1, %c1] : memref<1x2xf32, #tpu.memory_space<smem>>
    %c0_2 = arith.constant 0 : index
    %2 = memref.load %arg2[%c0_2] : memref<1xf32, #tpu.memory_space<smem>>
    %c0_3 = arith.constant 0 : index
    %c0_4 = arith.constant 0 : index
    %3 = vector.load %arg4[%c0_3, %c0_4] : memref<8x128xf32, #tpu.memory_space<vmem>>, vector<8x128xf32>
    %4 = math.sin %3 : vector<8x128xf32>
    %c0_5 = arith.constant 0 : index
    %c0_6 = arith.constant 0 : index
    %5 = vector.load %arg3[%c0_5, %c0_6] : memref<8x128xf32, #tpu.memory_space<vmem>>, vector<8x128xf32>
    %6 = vector.broadcast %0 : f32 to vector<8x128xf32>
    %7 = arith.mulf %5, %6 : vector<8x128xf32>
    %8 = vector.broadcast %1 : f32 to vector<8x128xf32>
    %9 = arith.mulf %4, %8 : vector<8x128xf32>
    %10 = arith.addf %7, %9 : vector<8x128xf32>
    %11 = vector.broadcast %2 : f32 to vector<8x128xf32>
    %12 = arith.addf %10, %11 : vector<8x128xf32>
    %c0_7 = arith.constant 0 : index
    %c0_8 = arith.constant 0 : index
    %13 = vector.load %arg5[%c0_7, %c0_8] : memref<8x128xf32, #tpu.memory_space<vmem>>, vector<8x128xf32>
    tpu.vector_store %arg5[%c0_7, %c0_8], %12 {strides = array<i32>} : memref<8x128xf32, #tpu.memory_space<vmem>>, vector<8x128xf32>,
    return
  }
  func.func @transform_0(%arg0: i32) -> (i32, i32) {
    %c0_i32 = arith.constant 0 : i32
    %c0_i32_0 = arith.constant 0 : i32
    %c0_i32_1 = arith.constant 0 : i32
    return %c0_i32, %c0_i32_0 : i32, i32
  }
  func.func @transform_1(%arg0: i32) -> i32 {
    %c0_i32 = arith.constant 0 : i32
    %c0_i32_0 = arith.constant 0 : i32
    return %c0_i32 : i32
  }
  func.func @transform_2(%arg0: i32) -> (i32, i32) {
    %c0_i32 = arith.constant 0 : i32
    %c0_i32_0 = arith.constant 0 : i32
    return %arg0, %c0_i32 : i32, i32
  }
  func.func @transform_3(%arg0: i32) -> (i32, i32) {
    %c0_i32 = arith.constant 0 : i32
    %c0_i32_0 = arith.constant 0 : i32
    return %arg0, %c0_i32 : i32, i32
  }
  func.func @transform_4(%arg0: i32) -> (i32, i32) {
    %c0_i32 = arith.constant 0 : i32
    %c0_i32_0 = arith.constant 0 : i32
    return %arg0, %c0_i32 : i32, i32
  }
}

</mosaic_0001>

<llo_original>
// kernel: tpu_custom_call.1
$region0: #{tpu_custom_call.1}
  #allocation0 [shape = 'u32[]', space=smem, size = 0x4, offset = 0x4, fixed_abs, tag = 'smem constant byte address 0x4 - core index']
  #allocation1 [shape = 'u32[144,128]{1,0:T(1,128)}', space=vmem, size = 0x12000, scoped, tag = 'internal scratch']
  #allocation2 [shape = 'f32[1]{0:T(128)S(6)}', space=smem, size = 0x200, scoped, tag = 'scoped memory for tpu_custom_call.1']
  %s0 = inlined_call_operand.vmem [shape: f32[1,2], index: 0, kind: input, shape index: {}]
  %s1 = inlined_call_operand.<no memory space> [shape: f32[1], index: 1, kind: input, shape index: {}]
  %s2 = inlined_call_operand.hbm [shape: f32[8,128], index: 2, kind: input, shape index: {}]
  %s3 = inlined_call_operand.vmem [shape: f32[8,128], index: 3, kind: input, shape index: {}]
  %s4 = inlined_call_operand.hbm [shape: f32[8,128], index: 4, kind: output, shape index: {}]
  %s5 = sld [smem:[#allocation0]]
  $region34: #{tpu_custom_call.1} parent=0
    _
  %s7 = ssub.s32 1, %s5
  %s8 = scalar_select 0, %s7, %s5
  %9 = sst [smem:[#allocation2]] %s1
  $region1: #{tpu_custom_call.1} parent=0
    #allocation3 [shape = 'u8[512]{0}', space=smem, size = 0x200, scoped, tag = 'input window, operand 0, single buffered']
    #allocation4 [shape = 's32[1]{0}', space=sflag, size = 0x4, scoped, tag = 'scoped memory for tpu_custom_call.1']
    #allocation5 [shape = 's32[1]{0}', space=sflag, size = 0x4, scoped, tag = 'scoped memory for tpu_custom_call.1']
    #allocation6 [shape = 's32[1]{0}', space=sflag, size = 0x4, scoped, tag = 'scoped memory for tpu_custom_call.1']
    #allocation7 [shape = 'u8[4096]{0}', space=vmem, size = 0x1000, scoped, tag = 'input window, operand 2, single buffered']
    #allocation8 [shape = 'u8[4096]{0}', space=vmem, size = 0x1000, scoped, tag = 'output window, operand 0, single buffered']
    %10 = vsyncpa [#allocation6], 0
    %11 = vsyncpa [#allocation4], 0
    %12 = vsyncpa [#allocation5], 0
    // Predicated region
    $region2: #{tpu_custom_call.1} parent=1 // pred_check
      _
    $region3: #{tpu_custom_call.1} parent=1 // pred_check_branch
      %14 = sbr.rel (0) target = $region5
    $region4: #{tpu_custom_call.1} parent=1 // pred_region
      %s16 = ssub.s32 16, 16
      %17 = vsyncadd [#allocation6], %s16
      %s19 = sshll.u32 %s0, 4
      %s20 = int_to_ptr.vmem [resolvable:$true] %s19
      %22 = dma.vmem_to_smem %s20, 16, [#allocation3], [#allocation6]
    $region5: #{tpu_custom_call.1} parent=1 // pred_fallthru
      _
    // Predicated region
    $region6: #{tpu_custom_call.1} parent=1 // pred_check
      _
    $region7: #{tpu_custom_call.1} parent=1 // pred_check_branch
      %24 = sbr.rel (0) target = $region9
    $region8: #{tpu_custom_call.1} parent=1 // pred_region
      _
    $region9: #{tpu_custom_call.1} parent=1 // pred_fallthru
      _
    // Predicated region
    $region10: #{tpu_custom_call.1} parent=1 // pred_check
      _
    $region11: #{tpu_custom_call.1} parent=1 // pred_check_branch
      %26 = sbr.rel (0) target = $region13
    $region12: #{tpu_custom_call.1} parent=1 // pred_region
      %s28 = ssub.s32 128, 128
      %29 = vsyncadd [#allocation4], %s28
      %s31 = sshll.u32 [#allocation7], 4
      %s32 = int_to_ptr.vmem [resolvable:$true] %s31
      %34 = dma.hbm_to_vmem [thread:$0]  %s2, 128, %s32, [#allocation4]
    $region13: #{tpu_custom_call.1} parent=1 // pred_fallthru
      _
    // Predicated region
    $region14: #{tpu_custom_call.1} parent=1 // pred_check
      _
    $region15: #{tpu_custom_call.1} parent=1 // pred_check_branch
      %36 = sbr.rel (0) target = $region17
    $region16: #{tpu_custom_call.1} parent=1 // pred_region
      _
    $region17: #{tpu_custom_call.1} parent=1 // pred_fallthru
      _
    // Predicated region
    $region18: #{tpu_custom_call.1} parent=1 // pred_check
      _
    $region19: #{tpu_custom_call.1} parent=1 // pred_check_branch
      %38 = sbr.rel (0) target = $region21
    $region20: #{tpu_custom_call.1} parent=1 // pred_region
      %39 = dma.done [#allocation6], 16
    $region21: #{tpu_custom_call.1} parent=1 // pred_fallthru
      _
    // Predicated region
    $region22: #{tpu_custom_call.1} parent=1 // pred_check
      _
    $region23: #{tpu_custom_call.1} parent=1 // pred_check_branch
      %41 = sbr.rel (0) target = $region25
    $region24: #{tpu_custom_call.1} parent=1 // pred_region
      %42 = dma.done [#allocation4], 128
    $region25: #{tpu_custom_call.1} parent=1 // pred_fallthru
      _
    %43 = sfence
    %s44 = sld [smem:[#allocation3]]
    %s45 = sld [smem:[#allocation3 + $0x1]]
    %s46 = sld [smem:[#allocation2]]
    %v47 = vld [vmem:[%s3] sm:$0xff]
    %v48 = vand.u32 2147483647, %v47
    %vm49 = vcmp.le.f32.partialorder %v48, 0.7853982
    %vm50 = vcmp.lt.s32.totalorder %v47, 0
    %v51 = vand.u32 %v47, 2139095040
    %v52 = vshrl.u32 %v51, 23
    %v53 = vsub.s32 %v52, 127
    %v54 = vand.u32 2147483647, %v47
    %v55 = vand.u32 %v54, 8388607
    %v56 = vor.u32 %v55, 8388608
    %v57 = vsub.s32 0, %v56
    %v58 = vadd.s32 %v53, 1
    %vm59 = vcmp.gt.s32.totalorder %v58, 0
    %v60 = vsel %vm59, %v58, 0
    %v61 = vshrl.u32 %v60, 5
    %v62 = vand.u32 %v60, 31
    %v63 = vsub.s32 32, %v62
    %v64 = vshrl.u32 683565275, %v63
    %v65 = vshll.u32 683565275, %v62
    %v66 = vshrl.u32 2475754826, %v63
    %v67 = vor.u32 %v65, %v66
    %v68 = vshll.u32 2475754826, %v62
    %v69 = vshrl.u32 2131351028, %v63
    %v70 = vor.u32 %v68, %v69
    %v71 = vshll.u32 2131351028, %v62
    %v72 = vshrl.u32 2102212464, %v63
    %v73 = vor.u32 %v71, %v72
    %v74 = vshll.u32 2102212464, %v62
    %v75 = vshrl.u32 920167782, %v63
    %v76 = vor.u32 %v74, %v75
    %v77 = vshll.u32 920167782, %v62
    %v78 = vshrl.u32 1326507024, %v63
    %v79 = vor.u32 %v77, %v78
    %vm80 = vcmp.lt.s32.totalorder %v61, 1
    %vm81 = vcmp.lt.s32.totalorder %v61, 2
    %vm82 = vcmp.lt.s32.totalorder %v61, 3
    %vm83 = vcmp.lt.s32.totalorder %v61, 4
    %v84 = vsel %vm80, %v64, %v67
    %v85 = vsel %vm83, %v73, 2102212464
    %v86 = vsel %vm82, %v70, %v85
    %v87 = vsel %vm81, %v84, %v86
    %v88 = vsel %vm80, %v67, %v70
    %v89 = vsel %vm83, %v76, 920167782
    %v90 = vsel %vm82, %v73, %v89
    %v91 = vsel %vm81, %v88, %v90
    %v92 = vsel %vm80, %v70, %v73
    %v93 = vsel %vm83, %v79, 1326507024
    %v94 = vsel %vm82, %v76, %v93
    %v95 = vsel %vm81, %v92, %v94
    %v96 = vshll.u32 %v56, 8
    %v97 = vmul.u32.u64.compose %v96, %v95
    %v98 = vextract.low.u32 %v97
    %v99 = vextract.high.u32 %v97
    %v100 = vmul.u32.u64.compose %v96, %v91
    %v101 = vextract.low.u32 %v100
    %v102 = vextract.high.u32 %v100
    %v103 = vmul.u32 %v96, %v87
    %v104 = vadd.s32 %v99, %v101
    %vm105 = vc.u32 %v99, %v101
    %v106 = vadd.s32 %v102, 1
    %v107 = vsel %vm105, %v106, %v102
    %v108 = vadd.s32 %v103, %v107
    %v109 = vadd.s32 %v108, 536870912
    %v110 = vshrl.u32 %v109, 30
    %v111 = vshll.u32 %v110, 30
    %v112 = vsub.s32 %v108, %v111
    %vm113 = vcmp.lt.s32.totalorder %v112, 0
    %v114 = vsub.s32 0, %v112
    %v115 = vsel %vm113, %v114, %v112
    %v116 = vclz %v115
    %v117 = vsub.s32 %v116, 2
    %vm118 = vcmp.gt.s32.totalorder 0, %v117
    %v119 = vsel %vm118, 0, %v117
    %v120 = vsub.s32 32, %v119
    %v121 = vshll.u32 %v112, %v119
    %v122 = vshrl.u32 %v104, %v120
    %v123 = vor.u32 %v121, %v122
    %v124 = vsub.s32 4294967266, %v119
    %v125 = vadd.s32 %v124, 127
    %v126 = vshll.u32 %v125, 23
    %v127 = vor.u32 4788187, %v126
    %v128 = vand.u32 2147483647, %v127
    %v130 = vcvt.s32.f32 %v123
    %v131 = vmul.f32 %v130, %v128
    %v132 = vxor.u32 %v131, 2147483648
    %v133 = vsel %vm50, %v132, %v131
    %v134 = vsub.s32 4, %v110
    %v135 = vsel %vm50, %v134, %v110
    %v136 = vsel %vm49, %v47, %v133
    %v137 = vsel %vm49, 0, %v135
    %v138 = vcosq.f32.pop %v136
    %v139 = vsinq.f32.pop %v136
    %vm140 = vweird.f32 %v47
    %v141 = vadd.s32 %v137, 3
    %v142 = vand.u32 %v141, 3
    %vm143 = vcmp.lt.s32.totalorder %v142, 2
    %vm144 = vcmp.eq.s32.totalorder %v142, 0
    %v145 = vxor.u32 %v139, 2147483648
    %v146 = vsel %vm144, %v138, %v145
    %vm147 = vcmp.eq.s32.totalorder %v142, 2
    %v148 = vxor.u32 %v138, 2147483648
    %v149 = vsel %vm147, %v148, %v139
    %v150 = vsel %vm143, %v146, %v149
    %v151 = vsel %vm140, nan, %v150
    %v152 = vld [vmem:[#allocation7] sm:$0xff]
    %v153 = vstv %s44
    %v154 = vmul.f32 %v152, %v153
    %v155 = vstv %s45
    %v156 = vmul.f32 %v151, %v155
    %v157 = vadd.f32 %v154, %v156
    %v158 = vstv %s46
    %v159 = vadd.f32 %v157, %v158
    %160 = vst [vmem:[#allocation8] sm:$0xff] %v159
    // Predicated region
    $region26: #{tpu_custom_call.1} parent=1 // pred_check
      _
    $region27: #{tpu_custom_call.1} parent=1 // pred_check_branch
      %162 = sbr.rel (0) target = $region29
    $region28: #{tpu_custom_call.1} parent=1 // pred_region
      %s164 = ssub.s32 128, 128
      %165 = vsyncadd [#allocation5], %s164
      %s167 = sshll.u32 [#allocation8], 4
      %s168 = int_to_ptr.vmem [resolvable:$true] %s167
      %170 = dma.vmem_to_hbm [thread:$0]  %s168, 128, %s4, [#allocation5]
    $region29: #{tpu_custom_call.1} parent=1 // pred_fallthru
      _
    // Predicated region
    $region30: #{tpu_custom_call.1} parent=1 // pred_check
      _
    $region31: #{tpu_custom_call.1} parent=1 // pred_check_branch
      %172 = sbr.rel (0) target = $region33
    $region32: #{tpu_custom_call.1} parent=1 // pred_region
      %173 = dma.done [#allocation5], 128
    $region33: #{tpu_custom_call.1} parent=1 // pred_fallthru
      _
    %174 = vsyncpa [#allocation4], 1
    %175 = vsyncpa [#allocation5], 1
    %176 = vsyncpa [#allocation6], 1

</llo_original>
